<compile_context>
chip_gen: v7x
topology: tpu7x:2x2x1
jax: 0.10.0
libtpu: 0.0.40
codegen_flags: <defaults>
</compile_context>

<pallas_src>
import functools

import jax
import jax.numpy as jnp
from jax import lax
from jax.experimental import pallas as pl
from jax.experimental.pallas import tpu as pltpu


def _pkt_kernel(fs_ref, ft_ref, out_ref, xs_ref, xt_ref, acc_ref,
                *, eps, tm, n):
    i = pl.program_id(0)

    @pl.when(i == 0)
    def _init():
        # Row-wise L2 normalization (+eps) and NaN scrub, done once and
        # cached in VMEM scratch for all row tiles.  One divide per row,
        # then a broadcast multiply (cheaper than an elementwise divide).
        fs = fs_ref[...]
        ft = ft_ref[...]
        s_norm = jnp.sqrt(jnp.sum(fs * fs, axis=1, keepdims=True))
        t_norm = jnp.sqrt(jnp.sum(ft * ft, axis=1, keepdims=True))
        xs = fs * (1.0 / (s_norm + eps))
        xt = ft * (1.0 / (t_norm + eps))
        xs_ref[...] = jnp.where(xs == xs, xs, jnp.zeros_like(xs))  # NaN -> 0
        xt_ref[...] = jnp.where(xt == xt, xt, jnp.zeros_like(xt))
        acc_ref[...] = jnp.zeros_like(acc_ref)

    row0 = pl.multiple_of(i * tm, tm)
    xs_rows = xs_ref[pl.ds(row0, tm), :]            # (TM, D)
    xt_rows = xt_ref[pl.ds(row0, tm), :]            # (TM, D)

    # (TM, N) row blocks of the cosine Gram matrices.  Contract on the
    # feature axis directly (no explicit transpose) -> one MXU matmul each.
    dn = (((1,), (1,)), ((), ()))
    sim_s = lax.dot_general(xs_rows, xs_ref[...], dn,
                            precision=lax.Precision.HIGHEST,
                            preferred_element_type=jnp.float32)
    sim_t = lax.dot_general(xt_rows, xt_ref[...], dn,
                            precision=lax.Precision.HIGHEST,
                            preferred_element_type=jnp.float32)

    sim_s = (sim_s + 1.0) * 0.5
    sim_t = (sim_t + 1.0) * 0.5
    # Row-normalize: one divide per row, broadcast multiply per element.
    sim_s = sim_s * (1.0 / jnp.sum(sim_s, axis=1, keepdims=True))
    sim_t = sim_t * (1.0 / jnp.sum(sim_t, axis=1, keepdims=True))

    # TODO(synk): on v6e/v7x the elementwise KL body could run in bfloat16
    # (f32 accumulate) for ~2x VPU/EUP throughput; kept f32 for v5e parity
    # and exact reference semantics.
    kl = sim_t * jnp.log((sim_t + eps) / (sim_s + eps))

    # Wide accumulator: cheap VPU adds per tile; the cross-lane /
    # cross-sublane XLU collapse happens once, in the epilogue.
    acc_ref[...] += kl

    @pl.when(i == pl.num_programs(0) - 1)
    def _finish():
        total = jnp.sum(acc_ref[...], keepdims=True)        # (1, 1)
        out_ref[...] = total * (1.0 / float(n * n))          # torch.mean


def _row_tile(n):
    # Big tiles amortize the ~0.35 µs per grid step; fall back to a single
    # block for small / awkward N (keeps the dynamic row slice aligned).
    for t in (512, 256, 128):
        if n % t == 0:
            return t
    return n


def pkt_loss(f_s, f_t, eps=1e-7):
    """Pallas-TPU forward of PKTLoss; f_s, f_t are (N, D) feature matrices."""
    assert f_s.ndim == 2 and f_s.shape == f_t.shape, "PKT expects (N, D) features"
    n, d = f_s.shape
    f_s = f_s.astype(jnp.float32)
    f_t = f_t.astype(jnp.float32)
    tm = _row_tile(n)

    kernel = functools.partial(_pkt_kernel, eps=float(eps), tm=tm, n=n)

    out = pl.pallas_call(
        kernel,
        out_shape=jax.ShapeDtypeStruct((1, 1), jnp.float32),
        grid=(n // tm,),
        in_specs=[
            # Whole feature matrices, resident in VMEM across the grid
            # (constant block index -> copied in exactly once).
            pl.BlockSpec((n, d), lambda i: (0, 0)),
            pl.BlockSpec((n, d), lambda i: (0, 0)),
        ],
        out_specs=pl.BlockSpec((1, 1), lambda i: (0, 0)),
        scratch_shapes=[
            pltpu.VMEM((n, d), jnp.float32),   # normalized student features
            pltpu.VMEM((n, d), jnp.float32),   # normalized teacher features
            pltpu.VMEM((tm, n), jnp.float32),  # KL partial-sum accumulator
        ],
        compiler_params=pltpu.CompilerParams(
            # Single reduction axis (accumulator carried across row tiles).
            dimension_semantics=("arbitrary",),
            vmem_limit_bytes=96 << 20),
    )(f_s, f_t)
    return out[0, 0]


# ---------------------------------------------------------------------------
# Pure-JAX reference (mirrors the PyTorch module, for a sanity check only)
# ---------------------------------------------------------------------------
def _pkt_reference(output_net, target_net, eps=1e-7):
    o_norm = jnp.sqrt(jnp.sum(output_net ** 2, axis=1, keepdims=True))
    o = output_net / (o_norm + eps)
    o = jnp.where(jnp.isnan(o), 0.0, o)
    t_norm = jnp.sqrt(jnp.sum(target_net ** 2, axis=1, keepdims=True))
    t = target_net / (t_norm + eps)
    t = jnp.where(jnp.isnan(t), 0.0, t)
    ms = jnp.matmul(o, o.T, precision=lax.Precision.HIGHEST)
    ts = jnp.matmul(t, t.T, precision=lax.Precision.HIGHEST)
    ms = (ms + 1.0) / 2.0
    ts = (ts + 1.0) / 2.0
    ms = ms / jnp.sum(ms, axis=1, keepdims=True)
    ts = ts / jnp.sum(ts, axis=1, keepdims=True)
    return jnp.mean(ts * jnp.log((ts + eps) / (ms + eps)))


if __name__ == "__main__":
    key = jax.random.PRNGKey(0)
    k1, k2 = jax.random.split(key)
    N, D = 8, 32                       # small: batch=8, hidden=32
    f_s = jax.random.normal(k1, (N, D), jnp.float32)
    f_t = jax.random.normal(k2, (N, D), jnp.float32)

    loss = pkt_loss(f_s, f_t)
    jax.block_until_ready(loss)

    ref = _pkt_reference(f_s, f_t)
    err = abs(float(loss) - float(ref))
    assert err <= 1e-6 + 1e-3 * abs(float(ref)), (float(loss), float(ref))
    print("KERNEL_OK")
</pallas_src>

<mosaic_0001>
module attributes {stable_mosaic.version = 11 : i64} {
  func.func @_pkt_kernel(%arg0: i32, %arg1: memref<8x32xf32, #tpu.memory_space<vmem>>, %arg2: memref<8x32xf32, #tpu.memory_space<vmem>>, %arg3: memref<1x1xf32, #tpu.memory_space<vmem>>, %arg4: memref<8x32xf32, #tpu.memory_space<vmem>>, %arg5: memref<8x32xf32, #tpu.memory_space<vmem>>, %arg6: memref<8x8xf32, #tpu.memory_space<vmem>>) attributes {dimension_semantics = [#tpu.dimension_semantics<arbitrary>], iteration_bounds = array<i64: 1>, scalar_prefetch = 0 : i64, scratch_operands = 3 : i64, tpu.core_type = #tpu.core_type<tc>, window_params = [{pipeline_mode = #tpu.pipeline_mode<synchronous>, transform_indices = @transform_0, window_bounds = array<i64: 8, 32>}, {pipeline_mode = #tpu.pipeline_mode<synchronous>, transform_indices = @transform_1, window_bounds = array<i64: 8, 32>}, {pipeline_mode = #tpu.pipeline_mode<synchronous>, transform_indices = @transform_2, window_bounds = array<i64: 1, 1>}]} {
    %c0_i32 = arith.constant 0 : i32
    %0 = arith.cmpi eq, %arg0, %c0_i32 : i32
    %1 = arith.extui %0 : i1 to i32
    %c0_i32_0 = arith.constant 0 : i32
    %2 = arith.cmpi ne, %1, %c0_i32_0 : i32
    scf.if %2 {
      %c0_23 = arith.constant 0 : index
      %c0_24 = arith.constant 0 : index
      %46 = vector.load %arg1[%c0_23, %c0_24] : memref<8x32xf32, #tpu.memory_space<vmem>>, vector<8x32xf32>
      %c0_25 = arith.constant 0 : index
      %c0_26 = arith.constant 0 : index
      %47 = vector.load %arg2[%c0_25, %c0_26] : memref<8x32xf32, #tpu.memory_space<vmem>>, vector<8x32xf32>
      %48 = arith.mulf %46, %46 : vector<8x32xf32>
      %cst_27 = arith.constant dense<0.000000e+00> : vector<8xf32>
      %49 = vector.multi_reduction <add>, %48, %cst_27 [1] : vector<8x32xf32> to vector<8xf32>
      %50 = vector.shape_cast %49 : vector<8xf32> to vector<8x1xf32>
      %51 = math.sqrt %50 : vector<8x1xf32>
      %52 = arith.mulf %47, %47 : vector<8x32xf32>
      %cst_28 = arith.constant dense<0.000000e+00> : vector<8xf32>
      %53 = vector.multi_reduction <add>, %52, %cst_28 [1] : vector<8x32xf32> to vector<8xf32>
      %54 = vector.shape_cast %53 : vector<8xf32> to vector<8x1xf32>
      %55 = math.sqrt %54 : vector<8x1xf32>
      %cst_29 = arith.constant 1.000000e-07 : f32
      %56 = vector.broadcast %cst_29 : f32 to vector<8x1xf32>
      %57 = arith.addf %51, %56 : vector<8x1xf32>
      %cst_30 = arith.constant 1.000000e+00 : f32
      %58 = vector.broadcast %cst_30 : f32 to vector<8x1xf32>
      %59 = arith.divf %58, %57 : vector<8x1xf32>
      %60 = vector.broadcast %59 : vector<8x1xf32> to vector<8x32xf32>
      %61 = arith.mulf %46, %60 : vector<8x32xf32>
      %cst_31 = arith.constant 1.000000e-07 : f32
      %62 = vector.broadcast %cst_31 : f32 to vector<8x1xf32>
      %63 = arith.addf %55, %62 : vector<8x1xf32>
      %cst_32 = arith.constant 1.000000e+00 : f32
      %64 = vector.broadcast %cst_32 : f32 to vector<8x1xf32>
      %65 = arith.divf %64, %63 : vector<8x1xf32>
      %66 = vector.broadcast %65 : vector<8x1xf32> to vector<8x32xf32>
      %67 = arith.mulf %47, %66 : vector<8x32xf32>
      %68 = arith.cmpf oeq, %61, %61 : vector<8x32xf32>
      %cst_33 = arith.constant 0.000000e+00 : f32
      %69 = vector.broadcast %cst_33 : f32 to vector<8x32xf32>
      %70 = arith.select %68, %61, %69 : vector<8x32xi1>, vector<8x32xf32>
      %c0_34 = arith.constant 0 : index
      %c0_35 = arith.constant 0 : index
      %71 = vector.load %arg4[%c0_34, %c0_35] : memref<8x32xf32, #tpu.memory_space<vmem>>, vector<8x32xf32>
      tpu.vector_store %arg4[%c0_34, %c0_35], %70 {strides = array<i32>} : memref<8x32xf32, #tpu.memory_space<vmem>>, vector<8x32xf32>,
      %72 = arith.cmpf oeq, %67, %67 : vector<8x32xf32>
      %cst_36 = arith.constant 0.000000e+00 : f32
      %73 = vector.broadcast %cst_36 : f32 to vector<8x32xf32>
      %74 = arith.select %72, %67, %73 : vector<8x32xi1>, vector<8x32xf32>
      %c0_37 = arith.constant 0 : index
      %c0_38 = arith.constant 0 : index
      %75 = vector.load %arg5[%c0_37, %c0_38] : memref<8x32xf32, #tpu.memory_space<vmem>>, vector<8x32xf32>
      tpu.vector_store %arg5[%c0_37, %c0_38], %74 {strides = array<i32>} : memref<8x32xf32, #tpu.memory_space<vmem>>, vector<8x32xf32>,
      %cst_39 = arith.constant 0.000000e+00 : f32
      %76 = vector.broadcast %cst_39 : f32 to vector<8x8xf32>
      %c0_40 = arith.constant 0 : index
      %c0_41 = arith.constant 0 : index
      %77 = vector.load %arg6[%c0_40, %c0_41] : memref<8x8xf32, #tpu.memory_space<vmem>>, vector<8x8xf32>
      tpu.vector_store %arg6[%c0_40, %c0_41], %76 {strides = array<i32>} : memref<8x8xf32, #tpu.memory_space<vmem>>, vector<8x8xf32>,
    } else {
    }
    %c8_i32 = arith.constant 8 : i32
    %3 = arith.muli %arg0, %c8_i32 : i32
    %4 = tpu.assume_multiple %3, 8 : i32
    %5 = arith.index_cast %4 : i32 to index
    %c0 = arith.constant 0 : index
    %6 = vector.load %arg4[%5, %c0] : memref<8x32xf32, #tpu.memory_space<vmem>>, vector<8x32xf32>
    %7 = arith.index_cast %4 : i32 to index
    %c0_1 = arith.constant 0 : index
    %8 = vector.load %arg5[%7, %c0_1] : memref<8x32xf32, #tpu.memory_space<vmem>>, vector<8x32xf32>
    %c0_2 = arith.constant 0 : index
    %c0_3 = arith.constant 0 : index
    %9 = vector.load %arg4[%c0_2, %c0_3] : memref<8x32xf32, #tpu.memory_space<vmem>>, vector<8x32xf32>
    %cst = arith.constant dense<0.000000e+00> : vector<8x8xf32>
    %10 = tpu.matmul %6, %9, %cst {dimension_numbers = #tpu.dot_dimension_numbers<[1], [1], [0], [0], [0, 0, 1, 0], [], []>, precision = #tpu.contract_precision<fp32>} : vector<8x32xf32>, vector<8x32xf32>, vector<8x8xf32> -> vector<8x8xf32>
    %c0_4 = arith.constant 0 : index
    %c0_5 = arith.constant 0 : index
    %11 = vector.load %arg5[%c0_4, %c0_5] : memref<8x32xf32, #tpu.memory_space<vmem>>, vector<8x32xf32>
    %cst_6 = arith.constant dense<0.000000e+00> : vector<8x8xf32>
    %12 = tpu.matmul %8, %11, %cst_6 {dimension_numbers = #tpu.dot_dimension_numbers<[1], [1], [0], [0], [0, 0, 1, 0], [], []>, precision = #tpu.contract_precision<fp32>} : vector<8x32xf32>, vector<8x32xf32>, vector<8x8xf32> -> vector<8x8xf32>
    %cst_7 = arith.constant 1.000000e+00 : f32
    %13 = vector.broadcast %cst_7 : f32 to vector<8x8xf32>
    %14 = arith.addf %10, %13 : vector<8x8xf32>
    %cst_8 = arith.constant 5.000000e-01 : f32
    %15 = vector.broadcast %cst_8 : f32 to vector<8x8xf32>
    %16 = arith.mulf %14, %15 : vector<8x8xf32>
    %cst_9 = arith.constant 1.000000e+00 : f32
    %17 = vector.broadcast %cst_9 : f32 to vector<8x8xf32>
    %18 = arith.addf %12, %17 : vector<8x8xf32>
    %cst_10 = arith.constant 5.000000e-01 : f32
    %19 = vector.broadcast %cst_10 : f32 to vector<8x8xf32>
    %20 = arith.mulf %18, %19 : vector<8x8xf32>
    %cst_11 = arith.constant dense<0.000000e+00> : vector<8xf32>
    %21 = vector.multi_reduction <add>, %16, %cst_11 [1] : vector<8x8xf32> to vector<8xf32>
    %22 = vector.shape_cast %21 : vector<8xf32> to vector<8x1xf32>
    %cst_12 = arith.constant 1.000000e+00 : f32
    %23 = vector.broadcast %cst_12 : f32 to vector<8x1xf32>
    %24 = arith.divf %23, %22 : vector<8x1xf32>
    %25 = vector.broadcast %24 : vector<8x1xf32> to vector<8x8xf32>
    %26 = arith.mulf %16, %25 : vector<8x8xf32>
    %cst_13 = arith.constant dense<0.000000e+00> : vector<8xf32>
    %27 = vector.multi_reduction <add>, %20, %cst_13 [1] : vector<8x8xf32> to vector<8xf32>
    %28 = vector.shape_cast %27 : vector<8xf32> to vector<8x1xf32>
    %cst_14 = arith.constant 1.000000e+00 : f32
    %29 = vector.broadcast %cst_14 : f32 to vector<8x1xf32>
    %30 = arith.divf %29, %28 : vector<8x1xf32>
    %31 = vector.broadcast %30 : vector<8x1xf32> to vector<8x8xf32>
    %32 = arith.mulf %20, %31 : vector<8x8xf32>
    %cst_15 = arith.constant 1.000000e-07 : f32
    %33 = vector.broadcast %cst_15 : f32 to vector<8x8xf32>
    %34 = arith.addf %32, %33 : vector<8x8xf32>
    %cst_16 = arith.constant 1.000000e-07 : f32
    %35 = vector.broadcast %cst_16 : f32 to vector<8x8xf32>
    %36 = arith.addf %26, %35 : vector<8x8xf32>
    %37 = arith.divf %34, %36 : vector<8x8xf32>
    %38 = math.log %37 : vector<8x8xf32>
    %39 = arith.mulf %32, %38 : vector<8x8xf32>
    %c0_17 = arith.constant 0 : index
    %c0_18 = arith.constant 0 : index
    %40 = vector.load %arg6[%c0_17, %c0_18] : memref<8x8xf32, #tpu.memory_space<vmem>>, vector<8x8xf32>
    %41 = arith.addf %40, %39 : vector<8x8xf32>
    %c0_19 = arith.constant 0 : index
    %c0_20 = arith.constant 0 : index
    %42 = vector.load %arg6[%c0_19, %c0_20] : memref<8x8xf32, #tpu.memory_space<vmem>>, vector<8x8xf32>
    tpu.vector_store %arg6[%c0_19, %c0_20], %41 {strides = array<i32>} : memref<8x8xf32, #tpu.memory_space<vmem>>, vector<8x8xf32>,
    %c0_i32_21 = arith.constant 0 : i32
    %43 = arith.cmpi eq, %arg0, %c0_i32_21 : i32
    %44 = arith.extui %43 : i1 to i32
    %c0_i32_22 = arith.constant 0 : i32
    %45 = arith.cmpi ne, %44, %c0_i32_22 : i32
    scf.if %45 {
      %c0_23 = arith.constant 0 : index
      %c0_24 = arith.constant 0 : index
      %46 = vector.load %arg6[%c0_23, %c0_24] : memref<8x8xf32, #tpu.memory_space<vmem>>, vector<8x8xf32>
      %47 = vector.shape_cast %46 : vector<8x8xf32> to vector<1x8x8xf32>
      %cst_25 = arith.constant dense<0.000000e+00> : vector<1xf32>
      %48 = vector.multi_reduction <add>, %47, %cst_25 [1, 2] : vector<1x8x8xf32> to vector<1xf32>
      %49 = vector.shape_cast %48 : vector<1xf32> to vector<1x1x1xf32>
      %50 = vector.extract %49[0, 0, 0] : f32 from vector<1x1x1xf32>
      %51 = vector.broadcast %50 : f32 to vector<1x1xf32>
      %cst_26 = arith.constant 1.562500e-02 : f32
      %52 = vector.broadcast %cst_26 : f32 to vector<1x1xf32>
      %53 = arith.mulf %51, %52 : vector<1x1xf32>
      %c0_27 = arith.constant 0 : index
      %c0_28 = arith.constant 0 : index
      %54 = vector.load %arg3[%c0_27, %c0_28] : memref<1x1xf32, #tpu.memory_space<vmem>>, vector<1x1xf32>
      tpu.vector_store %arg3[%c0_27, %c0_28], %53 {strides = array<i32>} : memref<1x1xf32, #tpu.memory_space<vmem>>, vector<1x1xf32>,
    } else {
    }
    return
  }
  func.func @transform_0(%arg0: i32) -> (i32, i32) {
    %c0_i32 = arith.constant 0 : i32
    %c0_i32_0 = arith.constant 0 : i32
    %c0_i32_1 = arith.constant 0 : i32
    return %c0_i32, %c0_i32_0 : i32, i32
  }
  func.func @transform_1(%arg0: i32) -> (i32, i32) {
    %c0_i32 = arith.constant 0 : i32
    %c0_i32_0 = arith.constant 0 : i32
    %c0_i32_1 = arith.constant 0 : i32
    return %c0_i32, %c0_i32_0 : i32, i32
  }
  func.func @transform_2(%arg0: i32) -> (i32, i32) {
    %c0_i32 = arith.constant 0 : i32
    %c0_i32_0 = arith.constant 0 : i32
    %c0_i32_1 = arith.constant 0 : i32
    return %c0_i32, %c0_i32_0 : i32, i32
  }
}

</mosaic_0001>

<llo_original>
// kernel: tpu_custom_call.1
$region0: #{tpu_custom_call.1}
  #allocation0 [shape = 'u32[]', space=smem, size = 0x4, offset = 0x4, fixed_abs, tag = 'smem constant byte address 0x4 - core index']
  #allocation1 [shape = 'u32[144,128]{1,0:T(1,128)}', space=vmem, size = 0x12000, scoped, tag = 'internal scratch']
  #allocation2 [shape = 'f32[8,32]{1,0:T(8,128)}', space=vmem, size = 0x1000, scoped, tag = 'scratch operand']
  #allocation3 [shape = 'f32[8,32]{1,0:T(8,128)}', space=vmem, size = 0x1000, scoped, tag = 'scratch operand']
  #allocation4 [shape = 'f32[8,8]{1,0:T(8,128)}', space=vmem, size = 0x1000, scoped, tag = 'scratch operand']
  %s0 = inlined_call_operand.hbm [shape: f32[8,32], index: 0, kind: input, shape index: {}]
  %s1 = inlined_call_operand.hbm [shape: f32[8,32], index: 1, kind: input, shape index: {}]
  %s2 = inlined_call_operand.hbm [shape: f32[1,1], index: 2, kind: output, shape index: {}]
  %s3 = sld [smem:[#allocation0]]
  $region34: #{tpu_custom_call.1} parent=0
    _
  %s5 = ssub.s32 1, %s3
  %s6 = scalar_select 0, %s5, %s3
  $region1: #{tpu_custom_call.1} parent=0
    #allocation5 [shape = 'u8[4096]{0}', space=vmem, size = 0x1000, scoped, tag = 'input window, operand 0, single buffered']
    #allocation6 [shape = 's32[1]{0}', space=sflag, size = 0x4, scoped, tag = 'scoped memory for tpu_custom_call.1']
    #allocation7 [shape = 's32[1]{0}', space=sflag, size = 0x4, scoped, tag = 'scoped memory for tpu_custom_call.1']
    #allocation8 [shape = 'u8[4096]{0}', space=vmem, size = 0x1000, scoped, tag = 'input window, operand 1, single buffered']
    #allocation9 [shape = 's32[1]{0}', space=sflag, size = 0x4, scoped, tag = 'scoped memory for tpu_custom_call.1']
    #allocation10 [shape = 'u8[512]{0}', space=vmem, size = 0x400, scoped, tag = 'output window, operand 0, single buffered']
    %7 = vsyncpa [#allocation6], 0
    %8 = vsyncpa [#allocation9], 0
    %9 = vsyncpa [#allocation7], 0
    // Predicated region
    $region2: #{tpu_custom_call.1} parent=1 // pred_check
      _
    $region3: #{tpu_custom_call.1} parent=1 // pred_check_branch
      %11 = sbr.rel (0) target = $region5
    $region4: #{tpu_custom_call.1} parent=1 // pred_region
      %s13 = ssub.s32 128, 128
      %14 = vsyncadd [#allocation6], %s13
      %s16 = sshll.u32 [#allocation5], 4
      %s17 = int_to_ptr.vmem [resolvable:$true] %s16
      %19 = dma.hbm_to_vmem [thread:$0]  %s0, 128, %s17, [#allocation6]
    $region5: #{tpu_custom_call.1} parent=1 // pred_fallthru
      _
    // Predicated region
    $region6: #{tpu_custom_call.1} parent=1 // pred_check
      _
    $region7: #{tpu_custom_call.1} parent=1 // pred_check_branch
      %21 = sbr.rel (0) target = $region9
    $region8: #{tpu_custom_call.1} parent=1 // pred_region
      %s23 = ssub.s32 128, 128
      %24 = vsyncadd [#allocation9], %s23
      %s26 = sshll.u32 [#allocation8], 4
      %s27 = int_to_ptr.vmem [resolvable:$true] %s26
      %29 = dma.hbm_to_vmem [thread:$0]  %s1, 128, %s27, [#allocation9]
    $region9: #{tpu_custom_call.1} parent=1 // pred_fallthru
      _
    // Predicated region
    $region10: #{tpu_custom_call.1} parent=1 // pred_check
      _
    $region11: #{tpu_custom_call.1} parent=1 // pred_check_branch
      %31 = sbr.rel (0) target = $region13
    $region12: #{tpu_custom_call.1} parent=1 // pred_region
      %32 = dma.done [#allocation6], 128
    $region13: #{tpu_custom_call.1} parent=1 // pred_fallthru
      _
    // Predicated region
    $region14: #{tpu_custom_call.1} parent=1 // pred_check
      _
    $region15: #{tpu_custom_call.1} parent=1 // pred_check_branch
      %34 = sbr.rel (0) target = $region17
    $region16: #{tpu_custom_call.1} parent=1 // pred_region
      %35 = dma.done [#allocation9], 128
    $region17: #{tpu_custom_call.1} parent=1 // pred_fallthru
      _
    %p36 = scmp.eq.s32.totalorder 0, 0
    // Predicated region
    $region18: #{tpu_custom_call.1} parent=1 // pred_check
      %p37 = pneg %p36
    $region19: #{tpu_custom_call.1} parent=1 // pred_check_branch
      %39 = sbr.rel (%p37) target = $region21
    $region20: #{tpu_custom_call.1} parent=1 // pred_region
      %v40 = vld [vmem:[#allocation5] sm:$0xff]
      %v41 = vld [vmem:[#allocation8] sm:$0xff]
      %v42 = vmul.f32 %v40, %v40
      %vm43 = vcmask 261120
      %v44 = vsel %vm43, %v42, 0.0
      %45 = vadd.xlane.f32.xlu0 %v44
      %v46 = vpop.xlane.xlu0 %45
      %v47 = vrsqrt.pop %v46
      %v48 = vmul.f32 %v46, %v47
      %vm49 = vcmp.eq.f32.partialorder %v46, inf
      %v50 = vsel %vm49, %v46, %v48
      %vm51 = vcmp.eq.f32.partialorder %v46, 0.0
      %v52 = vand.u32 %v46, 2147483648
      %v53 = vsel %vm51, %v52, %v50
      %v54 = vmul.f32 %v41, %v41
      %v55 = vsel %vm43, %v54, 0.0
      %56 = vadd.xlane.f32.xlu0 %v55
      %v57 = vpop.xlane.xlu0 %56
      %v58 = vrsqrt.pop %v57
      %v59 = vmul.f32 %v57, %v58
      %vm60 = vcmp.eq.f32.partialorder %v57, inf
      %v61 = vsel %vm60, %v57, %v59
      %vm62 = vcmp.eq.f32.partialorder %v57, 0.0
      %v63 = vand.u32 %v57, 2147483648
      %v64 = vsel %vm62, %v63, %v61
      %v65 = vadd.f32 %v53, 1e-07
      %v66 = vrcp.pop %v65
      %v67 = vmul.f32 1.0, %v66
      %v68 = vmul.f32 %v40, %v67
      %v69 = vadd.f32 %v64, 1e-07
      %v70 = vrcp.pop %v69
      %v71 = vmul.f32 1.0, %v70
      %v72 = vmul.f32 %v41, %v71
      %vm73 = vcmp.eq.f32.partialorder %v68, %v68
      %v74 = vsel %vm73, %v68, 0.0
      %75 = vst.msk [vmem:[#allocation2] sm:$0xff] %vm43, %v74
      %vm76 = vcmp.eq.f32.partialorder %v72, %v72
      %v77 = vsel %vm76, %v72, 0.0
      %78 = vst.msk [vmem:[#allocation3] sm:$0xff] %vm43, %v77
      %vm79 = vcmask 64512
      %80 = vst.msk [vmem:[#allocation4] sm:$0xff] %vm79, 0.0
    $region21: #{tpu_custom_call.1} parent=1 // pred_fallthru
      _
    %s81 = smul.u32 0, 8
    %s82 = scalar_lea.vmem [#allocation2], %s81
    %v83 = vld [vmem:[%s82] sm:$0xff]
    %s84 = scalar_lea.vmem [#allocation3], %s81
    %v85 = vld [vmem:[%s84] sm:$0xff]
    %v86 = vld [vmem:[#allocation2] sm:$0xff]
    %v87 = vld [vmem:[#allocation3] sm:$0xff]
    %vm88 = vcmask 261120
    %v90 = vsel %vm88, %v83, 0
    %v93 = vsel %vm88, %v86, 0
    %95 = vmatprep.subr.mxu0 0.0
    %v96 = vand.u32 %v93, 4294901760
    %97 = vmatpush1.xpose.msra.mxu0 %v96
    %98 = vmatprep.subr.mxu0 0.0
    %99 = vmatpush1.xpose.msra.mxu0 0.0
    %100 = vmatprep.subr.mxu0 0.0
    %101 = vmatpush1.xpose.msra.mxu0 0.0
    %102 = vmatprep.subr.mxu0 0.0
    %103 = vmatpush1.xpose.msra.mxu0 0.0
    %104 = vmatprep.subr.mxu0 0.0
    %105 = vmatpush1.xpose.msra.mxu0 0.0
    %106 = vmatprep.subr.mxu0 0.0
    %107 = vmatpush1.xpose.msra.mxu0 0.0
    %108 = vmatprep.subr.mxu0 0.0
    %109 = vmatpush1.xpose.msra.mxu0 0.0
    %110 = vmatprep.subr.mxu0 0.0
    %111 = vmatpush1.xpose.msra.mxu0 0.0
    %112 = vmatprep.subr.mxu0 0.0
    %113 = vmatpush1.xpose.msra.mxu0 0.0
    %114 = vmatprep.subr.mxu0 0.0
    %115 = vmatpush1.xpose.msra.mxu0 0.0
    %116 = vmatprep.subr.mxu0 0.0
    %117 = vmatpush1.xpose.msra.mxu0 0.0
    %118 = vmatprep.subr.mxu0 0.0
    %119 = vmatpush1.xpose.msra.mxu0 0.0
    %120 = vmatprep.subr.mxu0 0.0
    %121 = vmatpush1.xpose.msra.mxu0 0.0
    %122 = vmatprep.subr.mxu0 0.0
    %123 = vmatpush1.xpose.msra.mxu0 0.0
    %124 = vmatprep.subr.mxu0 0.0
    %125 = vmatpush1.xpose.msra.mxu0 0.0
    %126 = vmatprep.subr.mxu0 0.0
    %127 = vmatpush1.xpose.msra.mxu0 0.0
    %128 = vmatprep.subr.mxu0 0.0
    %129 = vmatpush1.xpose.msra.mxu0 0.0
    %130 = vmatprep.subr.mxu0 0.0
    %131 = vmatpush1.xpose.msra.mxu0 0.0
    %132 = vmatprep.subr.mxu0 0.0
    %133 = vmatpush1.xpose.msra.mxu0 0.0
    %134 = vmatprep.subr.mxu0 0.0
    %135 = vmatpush1.xpose.msra.mxu0 0.0
    %136 = vmatprep.subr.mxu0 0.0
    %137 = vmatpush1.xpose.msra.mxu0 0.0
    %138 = vmatprep.subr.mxu0 0.0
    %139 = vmatpush1.xpose.msra.mxu0 0.0
    %140 = vmatprep.subr.mxu0 0.0
    %141 = vmatpush1.xpose.msra.mxu0 0.0
    %142 = vmatprep.subr.mxu0 0.0
    %143 = vmatpush1.xpose.msra.mxu0 0.0
    %144 = vmatprep.subr.mxu0 0.0
    %145 = vmatpush1.xpose.msra.mxu0 0.0
    %146 = vmatprep.subr.mxu0 0.0
    %147 = vmatpush1.xpose.msra.mxu0 0.0
    %148 = vmatprep.subr.mxu0 0.0
    %149 = vmatpush1.xpose.msra.mxu0 0.0
    %150 = vmatprep.subr.mxu0 0.0
    %151 = vmatpush1.xpose.msra.mxu0 0.0
    %152 = vmatprep.subr.mxu0 0.0
    %153 = vmatpush1.xpose.msra.mxu0 0.0
    %154 = vmatprep.subr.mxu0 0.0
    %155 = vmatpush1.xpose.msra.mxu0 0.0
    %156 = vmatprep.subr.mxu0 0.0
    %157 = vmatpush1.xpose.msra.mxu0 0.0
    %158 = vmatprep.subr.mxu0 0.0
    %159 = vmatpush1.xpose.msra.mxu0 0.0
    %160 = vmatprep.mubr.f32.mxu0 0.0
    %v161 = vand.u32 %v90, 4294901760
    %v162 = vsub.f32 %v90, %v161
    %v163 = vand.u32 %v162, 4294901760
    %v164 = vsub.f32 %v162, %v163
    %v165 = vand.u32 %v164, 4294901760
    %166 = vmatmul.mubr.f32.gmra.mrb[0].mxu0 %v165
    %v167 = vpop.f32.mrb[0].mxu0
    %v168 = vadd.f32 1.0, %v167
    %v169 = vpop.f32.mrb[0].mxu0
    %170 = vdwg.mxu0
    %171 = vmatprep.subr.mxu0 0.0
    %v172 = vand.u32 %v93, 4294901760
    %v173 = vsub.f32 %v93, %v172
    %v174 = vand.u32 %v173, 4294901760
    %v175 = vsub.f32 %v173, %v174
    %v176 = vand.u32 %v175, 4294901760
    %177 = vmatpush1.xpose.msra.mxu0 %v176
    %178 = vmatprep.subr.mxu0 0.0
    %179 = vmatpush1.xpose.msra.mxu0 0.0
    %180 = vmatprep.subr.mxu0 0.0
    %181 = vmatpush1.xpose.msra.mxu0 0.0
    %182 = vmatprep.subr.mxu0 0.0
    %183 = vmatpush1.xpose.msra.mxu0 0.0
    %184 = vmatprep.subr.mxu0 0.0
    %185 = vmatpush1.xpose.msra.mxu0 0.0
    %186 = vmatprep.subr.mxu0 0.0
    %187 = vmatpush1.xpose.msra.mxu0 0.0
    %188 = vmatprep.subr.mxu0 0.0
    %189 = vmatpush1.xpose.msra.mxu0 0.0
    %190 = vmatprep.subr.mxu0 0.0
    %191 = vmatpush1.xpose.msra.mxu0 0.0
    %192 = vmatprep.subr.mxu0 0.0
    %193 = vmatpush1.xpose.msra.mxu0 0.0
    %194 = vmatprep.subr.mxu0 0.0
    %195 = vmatpush1.xpose.msra.mxu0 0.0
    %196 = vmatprep.subr.mxu0 0.0
    %197 = vmatpush1.xpose.msra.mxu0 0.0
    %198 = vmatprep.subr.mxu0 0.0
    %199 = vmatpush1.xpose.msra.mxu0 0.0
    %200 = vmatprep.subr.mxu0 0.0
    %201 = vmatpush1.xpose.msra.mxu0 0.0
    %202 = vmatprep.subr.mxu0 0.0
    %203 = vmatpush1.xpose.msra.mxu0 0.0
    %204 = vmatprep.subr.mxu0 0.0
    %205 = vmatpush1.xpose.msra.mxu0 0.0
    %206 = vmatprep.subr.mxu0 0.0
    %207 = vmatpush1.xpose.msra.mxu0 0.0
    %208 = vmatprep.subr.mxu0 0.0
    %209 = vmatpush1.xpose.msra.mxu0 0.0
    %210 = vmatprep.subr.mxu0 0.0
    %211 = vmatpush1.xpose.msra.mxu0 0.0
    %212 = vmatprep.subr.mxu0 0.0
    %213 = vmatpush1.xpose.msra.mxu0 0.0
    %214 = vmatprep.subr.mxu0 0.0
    %215 = vmatpush1.xpose.msra.mxu0 0.0
    %216 = vmatprep.subr.mxu0 0.0
    %217 = vmatpush1.xpose.msra.mxu0 0.0
    %218 = vmatprep.subr.mxu0 0.0
    %219 = vmatpush1.xpose.msra.mxu0 0.0
    %220 = vmatprep.subr.mxu0 0.0
    %221 = vmatpush1.xpose.msra.mxu0 0.0
    %222 = vmatprep.subr.mxu0 0.0
    %223 = vmatpush1.xpose.msra.mxu0 0.0
    %224 = vmatprep.subr.mxu0 0.0
    %225 = vmatpush1.xpose.msra.mxu0 0.0
    %226 = vmatprep.subr.mxu0 0.0
    %227 = vmatpush1.xpose.msra.mxu0 0.0
    %228 = vmatprep.subr.mxu0 0.0
    %229 = vmatpush1.xpose.msra.mxu0 0.0
    %230 = vmatprep.subr.mxu0 0.0
    %231 = vmatpush1.xpose.msra.mxu0 0.0
    %232 = vmatprep.subr.mxu0 0.0
    %233 = vmatpush1.xpose.msra.mxu0 0.0
    %234 = vmatprep.subr.mxu0 0.0
    %235 = vmatpush1.xpose.msra.mxu0 0.0
    %236 = vmatprep.subr.mxu0 0.0
    %237 = vmatpush1.xpose.msra.mxu0 0.0
    %238 = vmatprep.subr.mxu0 0.0
    %239 = vmatpush1.xpose.msra.mxu0 0.0
    %240 = vmatprep.mubr.f32.mxu0 0.0
    %v241 = vand.u32 %v90, 4294901760
    %242 = vmatmul.mubr.f32.gmra.mrb[0].mxu0 %v241
    %v243 = vpop.f32.mrb[0].mxu0
    %v244 = vadd.f32 %v168, %v243
    %v245 = vpop.f32.mrb[0].mxu0
    %246 = vdwg.mxu0
    %247 = vmatprep.subr.mxu0 0.0
    %v248 = vand.u32 %v93, 4294901760
    %v249 = vsub.f32 %v93, %v248
    %250 = vmatpush1.xpose.msra.mxu0 %v249
    %251 = vmatprep.subr.mxu0 0.0
    %252 = vmatpush1.xpose.msra.mxu0 0.0
    %253 = vmatprep.subr.mxu0 0.0
    %254 = vmatpush1.xpose.msra.mxu0 0.0
    %255 = vmatprep.subr.mxu0 0.0
    %256 = vmatpush1.xpose.msra.mxu0 0.0
    %257 = vmatprep.subr.mxu0 0.0
    %258 = vmatpush1.xpose.msra.mxu0 0.0
    %259 = vmatprep.subr.mxu0 0.0
    %260 = vmatpush1.xpose.msra.mxu0 0.0
    %261 = vmatprep.subr.mxu0 0.0
    %262 = vmatpush1.xpose.msra.mxu0 0.0
    %263 = vmatprep.subr.mxu0 0.0
    %264 = vmatpush1.xpose.msra.mxu0 0.0
    %265 = vmatprep.subr.mxu0 0.0
    %266 = vmatpush1.xpose.msra.mxu0 0.0
    %267 = vmatprep.subr.mxu0 0.0
    %268 = vmatpush1.xpose.msra.mxu0 0.0
    %269 = vmatprep.subr.mxu0 0.0
    %270 = vmatpush1.xpose.msra.mxu0 0.0
    %271 = vmatprep.subr.mxu0 0.0
    %272 = vmatpush1.xpose.msra.mxu0 0.0
    %273 = vmatprep.subr.mxu0 0.0
    %274 = vmatpush1.xpose.msra.mxu0 0.0
    %275 = vmatprep.subr.mxu0 0.0
    %276 = vmatpush1.xpose.msra.mxu0 0.0
    %277 = vmatprep.subr.mxu0 0.0
    %278 = vmatpush1.xpose.msra.mxu0 0.0
    %279 = vmatprep.subr.mxu0 0.0
    %280 = vmatpush1.xpose.msra.mxu0 0.0
    %281 = vmatprep.subr.mxu0 0.0
    %282 = vmatpush1.xpose.msra.mxu0 0.0
    %283 = vmatprep.subr.mxu0 0.0
    %284 = vmatpush1.xpose.msra.mxu0 0.0
    %285 = vmatprep.subr.mxu0 0.0
    %286 = vmatpush1.xpose.msra.mxu0 0.0
    %287 = vmatprep.subr.mxu0 0.0
    %288 = vmatpush1.xpose.msra.mxu0 0.0
    %289 = vmatprep.subr.mxu0 0.0
    %290 = vmatpush1.xpose.msra.mxu0 0.0
    %291 = vmatprep.subr.mxu0 0.0
    %292 = vmatpush1.xpose.msra.mxu0 0.0
    %293 = vmatprep.subr.mxu0 0.0
    %294 = vmatpush1.xpose.msra.mxu0 0.0
    %295 = vmatprep.subr.mxu0 0.0
    %296 = vmatpush1.xpose.msra.mxu0 0.0
    %297 = vmatprep.subr.mxu0 0.0
    %298 = vmatpush1.xpose.msra.mxu0 0.0
    %299 = vmatprep.subr.mxu0 0.0
    %300 = vmatpush1.xpose.msra.mxu0 0.0
    %301 = vmatprep.subr.mxu0 0.0
    %302 = vmatpush1.xpose.msra.mxu0 0.0
    %303 = vmatprep.subr.mxu0 0.0
    %304 = vmatpush1.xpose.msra.mxu0 0.0
    %305 = vmatprep.subr.mxu0 0.0
    %306 = vmatpush1.xpose.msra.mxu0 0.0
    %307 = vmatprep.subr.mxu0 0.0
    %308 = vmatpush1.xpose.msra.mxu0 0.0
    %309 = vmatprep.subr.mxu0 0.0
    %310 = vmatpush1.xpose.msra.mxu0 0.0
    %311 = vmatprep.subr.mxu0 0.0
    %312 = vmatpush1.xpose.msra.mxu0 0.0
    %313 = vmatprep.mubr.f32.mxu0 0.0
    %v314 = vand.u32 %v90, 4294901760
    %v315 = vsub.f32 %v90, %v314
    %316 = vmatmul.mubr.f32.gmra.mrb[0].mxu0 %v315
    %v317 = vpop.f32.mrb[0].mxu0
    %v318 = vadd.f32 %v244, %v317
    %v319 = vpop.f32.mrb[0].mxu0
    %320 = vdwg.mxu0
    %321 = vmatprep.subr.mxu0 0.0
    %v322 = vand.u32 %v93, 4294901760
    %323 = vmatpush1.xpose.msra.mxu0 %v322
    %324 = vmatprep.subr.mxu0 0.0
    %325 = vmatpush1.xpose.msra.mxu0 0.0
    %326 = vmatprep.subr.mxu0 0.0
    %327 = vmatpush1.xpose.msra.mxu0 0.0
    %328 = vmatprep.subr.mxu0 0.0
    %329 = vmatpush1.xpose.msra.mxu0 0.0
    %330 = vmatprep.subr.mxu0 0.0
    %331 = vmatpush1.xpose.msra.mxu0 0.0
    %332 = vmatprep.subr.mxu0 0.0
    %333 = vmatpush1.xpose.msra.mxu0 0.0
    %334 = vmatprep.subr.mxu0 0.0
    %335 = vmatpush1.xpose.msra.mxu0 0.0
    %336 = vmatprep.subr.mxu0 0.0
    %337 = vmatpush1.xpose.msra.mxu0 0.0
    %338 = vmatprep.subr.mxu0 0.0
    %339 = vmatpush1.xpose.msra.mxu0 0.0
    %340 = vmatprep.subr.mxu0 0.0
    %341 = vmatpush1.xpose.msra.mxu0 0.0
    %342 = vmatprep.subr.mxu0 0.0
    %343 = vmatpush1.xpose.msra.mxu0 0.0
    %344 = vmatprep.subr.mxu0 0.0
    %345 = vmatpush1.xpose.msra.mxu0 0.0
    %346 = vmatprep.subr.mxu0 0.0
    %347 = vmatpush1.xpose.msra.mxu0 0.0
    %348 = vmatprep.subr.mxu0 0.0
    %349 = vmatpush1.xpose.msra.mxu0 0.0
    %350 = vmatprep.subr.mxu0 0.0
    %351 = vmatpush1.xpose.msra.mxu0 0.0
    %352 = vmatprep.subr.mxu0 0.0
    %353 = vmatpush1.xpose.msra.mxu0 0.0
    %354 = vmatprep.subr.mxu0 0.0
    %355 = vmatpush1.xpose.msra.mxu0 0.0
    %356 = vmatprep.subr.mxu0 0.0
    %357 = vmatpush1.xpose.msra.mxu0 0.0
    %358 = vmatprep.subr.mxu0 0.0
    %359 = vmatpush1.xpose.msra.mxu0 0.0
    %360 = vmatprep.subr.mxu0 0.0
    %361 = vmatpush1.xpose.msra.mxu0 0.0
    %362 = vmatprep.subr.mxu0 0.0
    %363 = vmatpush1.xpose.msra.mxu0 0.0
    %364 = vmatprep.subr.mxu0 0.0
    %365 = vmatpush1.xpose.msra.mxu0 0.0
    %366 = vmatprep.subr.mxu0 0.0
    %367 = vmatpush1.xpose.msra.mxu0 0.0
    %368 = vmatprep.subr.mxu0 0.0
    %369 = vmatpush1.xpose.msra.mxu0 0.0
    %370 = vmatprep.subr.mxu0 0.0
    %371 = vmatpush1.xpose.msra.mxu0 0.0
    %372 = vmatprep.subr.mxu0 0.0
    %373 = vmatpush1.xpose.msra.mxu0 0.0
    %374 = vmatprep.subr.mxu0 0.0
    %375 = vmatpush1.xpose.msra.mxu0 0.0
    %376 = vmatprep.subr.mxu0 0.0
    %377 = vmatpush1.xpose.msra.mxu0 0.0
    %378 = vmatprep.subr.mxu0 0.0
    %379 = vmatpush1.xpose.msra.mxu0 0.0
    %380 = vmatprep.subr.mxu0 0.0
    %381 = vmatpush1.xpose.msra.mxu0 0.0
    %382 = vmatprep.subr.mxu0 0.0
    %383 = vmatpush1.xpose.msra.mxu0 0.0
    %384 = vmatprep.subr.mxu0 0.0
    %385 = vmatpush1.xpose.msra.mxu0 0.0
    %386 = vmatprep.mubr.f32.mxu0 0.0
    %v387 = vand.u32 %v90, 4294901760
    %v388 = vsub.f32 %v90, %v387
    %v389 = vand.u32 %v388, 4294901760
    %390 = vmatmul.mubr.f32.gmra.mrb[0].mxu0 %v389
    %v391 = vpop.f32.mrb[0].mxu0
    %v392 = vadd.f32 %v318, %v391
    %v393 = vpop.f32.mrb[0].mxu0
    %394 = vdwg.mxu0
    %395 = vmatprep.subr.mxu0 0.0
    %v396 = vand.u32 %v93, 4294901760
    %v397 = vsub.f32 %v93, %v396
    %v398 = vand.u32 %v397, 4294901760
    %399 = vmatpush1.xpose.msra.mxu0 %v398
    %400 = vmatprep.subr.mxu0 0.0
    %401 = vmatpush1.xpose.msra.mxu0 0.0
    %402 = vmatprep.subr.mxu0 0.0
    %403 = vmatpush1.xpose.msra.mxu0 0.0
    %404 = vmatprep.subr.mxu0 0.0
    %405 = vmatpush1.xpose.msra.mxu0 0.0
    %406 = vmatprep.subr.mxu0 0.0
    %407 = vmatpush1.xpose.msra.mxu0 0.0
    %408 = vmatprep.subr.mxu0 0.0
    %409 = vmatpush1.xpose.msra.mxu0 0.0
    %410 = vmatprep.subr.mxu0 0.0
    %411 = vmatpush1.xpose.msra.mxu0 0.0
    %412 = vmatprep.subr.mxu0 0.0
    %413 = vmatpush1.xpose.msra.mxu0 0.0
    %414 = vmatprep.subr.mxu0 0.0
    %415 = vmatpush1.xpose.msra.mxu0 0.0
    %416 = vmatprep.subr.mxu0 0.0
    %417 = vmatpush1.xpose.msra.mxu0 0.0
    %418 = vmatprep.subr.mxu0 0.0
    %419 = vmatpush1.xpose.msra.mxu0 0.0
    %420 = vmatprep.subr.mxu0 0.0
    %421 = vmatpush1.xpose.msra.mxu0 0.0
    %422 = vmatprep.subr.mxu0 0.0
    %423 = vmatpush1.xpose.msra.mxu0 0.0
    %424 = vmatprep.subr.mxu0 0.0
    %425 = vmatpush1.xpose.msra.mxu0 0.0
    %426 = vmatprep.subr.mxu0 0.0
    %427 = vmatpush1.xpose.msra.mxu0 0.0
    %428 = vmatprep.subr.mxu0 0.0
    %429 = vmatpush1.xpose.msra.mxu0 0.0
    %430 = vmatprep.subr.mxu0 0.0
    %431 = vmatpush1.xpose.msra.mxu0 0.0
    %432 = vmatprep.subr.mxu0 0.0
    %433 = vmatpush1.xpose.msra.mxu0 0.0
    %434 = vmatprep.subr.mxu0 0.0
    %435 = vmatpush1.xpose.msra.mxu0 0.0
    %436 = vmatprep.subr.mxu0 0.0
    %437 = vmatpush1.xpose.msra.mxu0 0.0
    %438 = vmatprep.subr.mxu0 0.0
    %439 = vmatpush1.xpose.msra.mxu0 0.0
    %440 = vmatprep.subr.mxu0 0.0
    %441 = vmatpush1.xpose.msra.mxu0 0.0
    %442 = vmatprep.subr.mxu0 0.0
    %443 = vmatpush1.xpose.msra.mxu0 0.0
    %444 = vmatprep.subr.mxu0 0.0
    %445 = vmatpush1.xpose.msra.mxu0 0.0
    %446 = vmatprep.subr.mxu0 0.0
    %447 = vmatpush1.xpose.msra.mxu0 0.0
    %448 = vmatprep.subr.mxu0 0.0
    %449 = vmatpush1.xpose.msra.mxu0 0.0
    %450 = vmatprep.subr.mxu0 0.0
    %451 = vmatpush1.xpose.msra.mxu0 0.0
    %452 = vmatprep.subr.mxu0 0.0
    %453 = vmatpush1.xpose.msra.mxu0 0.0
    %454 = vmatprep.subr.mxu0 0.0
    %455 = vmatpush1.xpose.msra.mxu0 0.0
    %456 = vmatprep.subr.mxu0 0.0
    %457 = vmatpush1.xpose.msra.mxu0 0.0
    %458 = vmatprep.subr.mxu0 0.0
    %459 = vmatpush1.xpose.msra.mxu0 0.0
    %460 = vmatprep.subr.mxu0 0.0
    %461 = vmatpush1.xpose.msra.mxu0 0.0
    %462 = vmatprep.mubr.f32.mxu0 0.0
    %v463 = vand.u32 %v90, 4294901760
    %464 = vmatmul.mubr.f32.gmra.mrb[0].mxu0 %v463
    %v465 = vpop.f32.mrb[0].mxu0
    %v466 = vadd.f32 %v392, %v465
    %v467 = vpop.f32.mrb[0].mxu0
    %468 = vdwg.mxu0
    %469 = vmatprep.subr.mxu0 0.0
    %v470 = vand.u32 %v93, 4294901760
    %471 = vmatpush1.xpose.msra.mxu0 %v470
    %472 = vmatprep.subr.mxu0 0.0
    %473 = vmatpush1.xpose.msra.mxu0 0.0
    %474 = vmatprep.subr.mxu0 0.0
    %475 = vmatpush1.xpose.msra.mxu0 0.0
    %476 = vmatprep.subr.mxu0 0.0
    %477 = vmatpush1.xpose.msra.mxu0 0.0
    %478 = vmatprep.subr.mxu0 0.0
    %479 = vmatpush1.xpose.msra.mxu0 0.0
    %480 = vmatprep.subr.mxu0 0.0
    %481 = vmatpush1.xpose.msra.mxu0 0.0
    %482 = vmatprep.subr.mxu0 0.0
    %483 = vmatpush1.xpose.msra.mxu0 0.0
    %484 = vmatprep.subr.mxu0 0.0
    %485 = vmatpush1.xpose.msra.mxu0 0.0
    %486 = vmatprep.subr.mxu0 0.0
    %487 = vmatpush1.xpose.msra.mxu0 0.0
    %488 = vmatprep.subr.mxu0 0.0
    %489 = vmatpush1.xpose.msra.mxu0 0.0
    %490 = vmatprep.subr.mxu0 0.0
    %491 = vmatpush1.xpose.msra.mxu0 0.0
    %492 = vmatprep.subr.mxu0 0.0
    %493 = vmatpush1.xpose.msra.mxu0 0.0
    %494 = vmatprep.subr.mxu0 0.0
    %495 = vmatpush1.xpose.msra.mxu0 0.0
    %496 = vmatprep.subr.mxu0 0.0
    %497 = vmatpush1.xpose.msra.mxu0 0.0
    %498 = vmatprep.subr.mxu0 0.0
    %499 = vmatpush1.xpose.msra.mxu0 0.0
    %500 = vmatprep.subr.mxu0 0.0
    %501 = vmatpush1.xpose.msra.mxu0 0.0
    %502 = vmatprep.subr.mxu0 0.0
    %503 = vmatpush1.xpose.msra.mxu0 0.0
    %504 = vmatprep.subr.mxu0 0.0
    %505 = vmatpush1.xpose.msra.mxu0 0.0
    %506 = vmatprep.subr.mxu0 0.0
    %507 = vmatpush1.xpose.msra.mxu0 0.0
    %508 = vmatprep.subr.mxu0 0.0
    %509 = vmatpush1.xpose.msra.mxu0 0.0
    %510 = vmatprep.subr.mxu0 0.0
    %511 = vmatpush1.xpose.msra.mxu0 0.0
    %512 = vmatprep.subr.mxu0 0.0
    %513 = vmatpush1.xpose.msra.mxu0 0.0
    %514 = vmatprep.subr.mxu0 0.0
    %515 = vmatpush1.xpose.msra.mxu0 0.0
    %516 = vmatprep.subr.mxu0 0.0
    %517 = vmatpush1.xpose.msra.mxu0 0.0
    %518 = vmatprep.subr.mxu0 0.0
    %519 = vmatpush1.xpose.msra.mxu0 0.0
    %520 = vmatprep.subr.mxu0 0.0
    %521 = vmatpush1.xpose.msra.mxu0 0.0
    %522 = vmatprep.subr.mxu0 0.0
    %523 = vmatpush1.xpose.msra.mxu0 0.0
    %524 = vmatprep.subr.mxu0 0.0
    %525 = vmatpush1.xpose.msra.mxu0 0.0
    %526 = vmatprep.subr.mxu0 0.0
    %527 = vmatpush1.xpose.msra.mxu0 0.0
    %528 = vmatprep.subr.mxu0 0.0
    %529 = vmatpush1.xpose.msra.mxu0 0.0
    %530 = vmatprep.subr.mxu0 0.0
    %531 = vmatpush1.xpose.msra.mxu0 0.0
    %532 = vmatprep.subr.mxu0 0.0
    %533 = vmatpush1.xpose.msra.mxu0 0.0
    %534 = vmatprep.mubr.f32.mxu0 0.0
    %v535 = vand.u32 %v90, 4294901760
    %536 = vmatmul.mubr.f32.gmra.mrb[0].mxu0 %v535
    %v537 = vpop.f32.mrb[0].mxu0
    %v538 = vadd.f32 %v466, %v537
    %v539 = vpop.f32.mrb[0].mxu0
    %540 = vdwg.mxu0
    %v541 = vmul.f32 %v538, 0.5
    %v543 = vsel %vm88, %v85, 0
    %v546 = vsel %vm88, %v87, 0
    %548 = vmatprep.subr.mxu0 0.0
    %v549 = vand.u32 %v546, 4294901760
    %550 = vmatpush1.xpose.msra.mxu0 %v549
    %551 = vmatprep.subr.mxu0 0.0
    %552 = vmatpush1.xpose.msra.mxu0 0.0
    %553 = vmatprep.subr.mxu0 0.0
    %554 = vmatpush1.xpose.msra.mxu0 0.0
    %555 = vmatprep.subr.mxu0 0.0
    %556 = vmatpush1.xpose.msra.mxu0 0.0
    %557 = vmatprep.subr.mxu0 0.0
    %558 = vmatpush1.xpose.msra.mxu0 0.0
    %559 = vmatprep.subr.mxu0 0.0
    %560 = vmatpush1.xpose.msra.mxu0 0.0
    %561 = vmatprep.subr.mxu0 0.0
    %562 = vmatpush1.xpose.msra.mxu0 0.0
    %563 = vmatprep.subr.mxu0 0.0
    %564 = vmatpush1.xpose.msra.mxu0 0.0
    %565 = vmatprep.subr.mxu0 0.0
    %566 = vmatpush1.xpose.msra.mxu0 0.0
    %567 = vmatprep.subr.mxu0 0.0
    %568 = vmatpush1.xpose.msra.mxu0 0.0
    %569 = vmatprep.subr.mxu0 0.0
    %570 = vmatpush1.xpose.msra.mxu0 0.0
    %571 = vmatprep.subr.mxu0 0.0
    %572 = vmatpush1.xpose.msra.mxu0 0.0
    %573 = vmatprep.subr.mxu0 0.0
    %574 = vmatpush1.xpose.msra.mxu0 0.0
    %575 = vmatprep.subr.mxu0 0.0
    %576 = vmatpush1.xpose.msra.mxu0 0.0
    %577 = vmatprep.subr.mxu0 0.0
    %578 = vmatpush1.xpose.msra.mxu0 0.0
    %579 = vmatprep.subr.mxu0 0.0
    %580 = vmatpush1.xpose.msra.mxu0 0.0
    %581 = vmatprep.subr.mxu0 0.0
    %582 = vmatpush1.xpose.msra.mxu0 0.0
    %583 = vmatprep.subr.mxu0 0.0
    %584 = vmatpush1.xpose.msra.mxu0 0.0
    %585 = vmatprep.subr.mxu0 0.0
    %586 = vmatpush1.xpose.msra.mxu0 0.0
    %587 = vmatprep.subr.mxu0 0.0
    %588 = vmatpush1.xpose.msra.mxu0 0.0
    %589 = vmatprep.subr.mxu0 0.0
    %590 = vmatpush1.xpose.msra.mxu0 0.0
    %591 = vmatprep.subr.mxu0 0.0
    %592 = vmatpush1.xpose.msra.mxu0 0.0
    %593 = vmatprep.subr.mxu0 0.0
    %594 = vmatpush1.xpose.msra.mxu0 0.0
    %595 = vmatprep.subr.mxu0 0.0
    %596 = vmatpush1.xpose.msra.mxu0 0.0
    %597 = vmatprep.subr.mxu0 0.0
    %598 = vmatpush1.xpose.msra.mxu0 0.0
    %599 = vmatprep.subr.mxu0 0.0
    %600 = vmatpush1.xpose.msra.mxu0 0.0
    %601 = vmatprep.subr.mxu0 0.0
    %602 = vmatpush1.xpose.msra.mxu0 0.0
    %603 = vmatprep.subr.mxu0 0.0
    %604 = vmatpush1.xpose.msra.mxu0 0.0
    %605 = vmatprep.subr.mxu0 0.0
    %606 = vmatpush1.xpose.msra.mxu0 0.0
    %607 = vmatprep.subr.mxu0 0.0
    %608 = vmatpush1.xpose.msra.mxu0 0.0
    %609 = vmatprep.subr.mxu0 0.0
    %610 = vmatpush1.xpose.msra.mxu0 0.0
    %611 = vmatprep.subr.mxu0 0.0
    %612 = vmatpush1.xpose.msra.mxu0 0.0
    %613 = vmatprep.mubr.f32.mxu0 0.0
    %v614 = vand.u32 %v543, 4294901760
    %v615 = vsub.f32 %v543, %v614
    %v616 = vand.u32 %v615, 4294901760
    %v617 = vsub.f32 %v615, %v616
    %v618 = vand.u32 %v617, 4294901760
    %619 = vmatmul.mubr.f32.gmra.mrb[0].mxu0 %v618
    %v620 = vpop.f32.mrb[0].mxu0
    %v621 = vadd.f32 1.0, %v620
    %v622 = vpop.f32.mrb[0].mxu0
    %623 = vdwg.mxu0
    %624 = vmatprep.subr.mxu0 0.0
    %v625 = vand.u32 %v546, 4294901760
    %v626 = vsub.f32 %v546, %v625
    %v627 = vand.u32 %v626, 4294901760
    %v628 = vsub.f32 %v626, %v627
    %v629 = vand.u32 %v628, 4294901760
    %630 = vmatpush1.xpose.msra.mxu0 %v629
    %631 = vmatprep.subr.mxu0 0.0
    %632 = vmatpush1.xpose.msra.mxu0 0.0
    %633 = vmatprep.subr.mxu0 0.0
    %634 = vmatpush1.xpose.msra.mxu0 0.0
    %635 = vmatprep.subr.mxu0 0.0
    %636 = vmatpush1.xpose.msra.mxu0 0.0
    %637 = vmatprep.subr.mxu0 0.0
    %638 = vmatpush1.xpose.msra.mxu0 0.0
    %639 = vmatprep.subr.mxu0 0.0
    %640 = vmatpush1.xpose.msra.mxu0 0.0
    %641 = vmatprep.subr.mxu0 0.0
    %642 = vmatpush1.xpose.msra.mxu0 0.0
    %643 = vmatprep.subr.mxu0 0.0
    %644 = vmatpush1.xpose.msra.mxu0 0.0
    %645 = vmatprep.subr.mxu0 0.0
    %646 = vmatpush1.xpose.msra.mxu0 0.0
    %647 = vmatprep.subr.mxu0 0.0
    %648 = vmatpush1.xpose.msra.mxu0 0.0
    %649 = vmatprep.subr.mxu0 0.0
    %650 = vmatpush1.xpose.msra.mxu0 0.0
    %651 = vmatprep.subr.mxu0 0.0
    %652 = vmatpush1.xpose.msra.mxu0 0.0
    %653 = vmatprep.subr.mxu0 0.0
    %654 = vmatpush1.xpose.msra.mxu0 0.0
    %655 = vmatprep.subr.mxu0 0.0
    %656 = vmatpush1.xpose.msra.mxu0 0.0
    %657 = vmatprep.subr.mxu0 0.0
    %658 = vmatpush1.xpose.msra.mxu0 0.0
    %659 = vmatprep.subr.mxu0 0.0
    %660 = vmatpush1.xpose.msra.mxu0 0.0
    %661 = vmatprep.subr.mxu0 0.0
    %662 = vmatpush1.xpose.msra.mxu0 0.0
    %663 = vmatprep.subr.mxu0 0.0
    %664 = vmatpush1.xpose.msra.mxu0 0.0
    %665 = vmatprep.subr.mxu0 0.0
    %666 = vmatpush1.xpose.msra.mxu0 0.0
    %667 = vmatprep.subr.mxu0 0.0
    %668 = vmatpush1.xpose.msra.mxu0 0.0
    %669 = vmatprep.subr.mxu0 0.0
    %670 = vmatpush1.xpose.msra.mxu0 0.0
    %671 = vmatprep.subr.mxu0 0.0
    %672 = vmatpush1.xpose.msra.mxu0 0.0
    %673 = vmatprep.subr.mxu0 0.0
    %674 = vmatpush1.xpose.msra.mxu0 0.0
    %675 = vmatprep.subr.mxu0 0.0
    %676 = vmatpush1.xpose.msra.mxu0 0.0
    %677 = vmatprep.subr.mxu0 0.0
    %678 = vmatpush1.xpose.msra.mxu0 0.0
    %679 = vmatprep.subr.mxu0 0.0
    %680 = vmatpush1.xpose.msra.mxu0 0.0
    %681 = vmatprep.subr.mxu0 0.0
    %682 = vmatpush1.xpose.msra.mxu0 0.0
    %683 = vmatprep.subr.mxu0 0.0
    %684 = vmatpush1.xpose.msra.mxu0 0.0
    %685 = vmatprep.subr.mxu0 0.0
    %686 = vmatpush1.xpose.msra.mxu0 0.0
    %687 = vmatprep.subr.mxu0 0.0
    %688 = vmatpush1.xpose.msra.mxu0 0.0
    %689 = vmatprep.subr.mxu0 0.0
    %690 = vmatpush1.xpose.msra.mxu0 0.0
    %691 = vmatprep.subr.mxu0 0.0
    %692 = vmatpush1.xpose.msra.mxu0 0.0
    %693 = vmatprep.mubr.f32.mxu0 0.0
    %v694 = vand.u32 %v543, 4294901760
    %695 = vmatmul.mubr.f32.gmra.mrb[0].mxu0 %v694
    %v696 = vpop.f32.mrb[0].mxu0
    %v697 = vadd.f32 %v621, %v696
    %v698 = vpop.f32.mrb[0].mxu0
    %699 = vdwg.mxu0
    %700 = vmatprep.subr.mxu0 0.0
    %v701 = vand.u32 %v546, 4294901760
    %v702 = vsub.f32 %v546, %v701
    %703 = vmatpush1.xpose.msra.mxu0 %v702
    %704 = vmatprep.subr.mxu0 0.0
    %705 = vmatpush1.xpose.msra.mxu0 0.0
    %706 = vmatprep.subr.mxu0 0.0
    %707 = vmatpush1.xpose.msra.mxu0 0.0
    %708 = vmatprep.subr.mxu0 0.0
    %709 = vmatpush1.xpose.msra.mxu0 0.0
    %710 = vmatprep.subr.mxu0 0.0
    %711 = vmatpush1.xpose.msra.mxu0 0.0
    %712 = vmatprep.subr.mxu0 0.0
    %713 = vmatpush1.xpose.msra.mxu0 0.0
    %714 = vmatprep.subr.mxu0 0.0
    %715 = vmatpush1.xpose.msra.mxu0 0.0
    %716 = vmatprep.subr.mxu0 0.0
    %717 = vmatpush1.xpose.msra.mxu0 0.0
    %718 = vmatprep.subr.mxu0 0.0
    %719 = vmatpush1.xpose.msra.mxu0 0.0
    %720 = vmatprep.subr.mxu0 0.0
    %721 = vmatpush1.xpose.msra.mxu0 0.0
    %722 = vmatprep.subr.mxu0 0.0
    %723 = vmatpush1.xpose.msra.mxu0 0.0
    %724 = vmatprep.subr.mxu0 0.0
    %725 = vmatpush1.xpose.msra.mxu0 0.0
    %726 = vmatprep.subr.mxu0 0.0
    %727 = vmatpush1.xpose.msra.mxu0 0.0
    %728 = vmatprep.subr.mxu0 0.0
    %729 = vmatpush1.xpose.msra.mxu0 0.0
    %730 = vmatprep.subr.mxu0 0.0
    %731 = vmatpush1.xpose.msra.mxu0 0.0
    %732 = vmatprep.subr.mxu0 0.0
    %733 = vmatpush1.xpose.msra.mxu0 0.0
    %734 = vmatprep.subr.mxu0 0.0
    %735 = vmatpush1.xpose.msra.mxu0 0.0
    %736 = vmatprep.subr.mxu0 0.0
    %737 = vmatpush1.xpose.msra.mxu0 0.0
    %738 = vmatprep.subr.mxu0 0.0
    %739 = vmatpush1.xpose.msra.mxu0 0.0
    %740 = vmatprep.subr.mxu0 0.0
    %741 = vmatpush1.xpose.msra.mxu0 0.0
    %742 = vmatprep.subr.mxu0 0.0
    %743 = vmatpush1.xpose.msra.mxu0 0.0
    %744 = vmatprep.subr.mxu0 0.0
    %745 = vmatpush1.xpose.msra.mxu0 0.0
    %746 = vmatprep.subr.mxu0 0.0
    %747 = vmatpush1.xpose.msra.mxu0 0.0
    %748 = vmatprep.subr.mxu0 0.0
    %749 = vmatpush1.xpose.msra.mxu0 0.0
    %750 = vmatprep.subr.mxu0 0.0
    %751 = vmatpush1.xpose.msra.mxu0 0.0
    %752 = vmatprep.subr.mxu0 0.0
    %753 = vmatpush1.xpose.msra.mxu0 0.0
    %754 = vmatprep.subr.mxu0 0.0
    %755 = vmatpush1.xpose.msra.mxu0 0.0
    %756 = vmatprep.subr.mxu0 0.0
    %757 = vmatpush1.xpose.msra.mxu0 0.0
    %758 = vmatprep.subr.mxu0 0.0
    %759 = vmatpush1.xpose.msra.mxu0 0.0
    %760 = vmatprep.subr.mxu0 0.0
    %761 = vmatpush1.xpose.msra.mxu0 0.0
    %762 = vmatprep.subr.mxu0 0.0
    %763 = vmatpush1.xpose.msra.mxu0 0.0
    %764 = vmatprep.subr.mxu0 0.0
    %765 = vmatpush1.xpose.msra.mxu0 0.0
    %766 = vmatprep.mubr.f32.mxu0 0.0
    %v767 = vand.u32 %v543, 4294901760
    %v768 = vsub.f32 %v543, %v767
    %769 = vmatmul.mubr.f32.gmra.mrb[0].mxu0 %v768
    %v770 = vpop.f32.mrb[0].mxu0
    %v771 = vadd.f32 %v697, %v770
    %v772 = vpop.f32.mrb[0].mxu0
    %773 = vdwg.mxu0
    %774 = vmatprep.subr.mxu0 0.0
    %v775 = vand.u32 %v546, 4294901760
    %776 = vmatpush1.xpose.msra.mxu0 %v775
    %777 = vmatprep.subr.mxu0 0.0
    %778 = vmatpush1.xpose.msra.mxu0 0.0
    %779 = vmatprep.subr.mxu0 0.0
    %780 = vmatpush1.xpose.msra.mxu0 0.0
    %781 = vmatprep.subr.mxu0 0.0
    %782 = vmatpush1.xpose.msra.mxu0 0.0
    %783 = vmatprep.subr.mxu0 0.0
    %784 = vmatpush1.xpose.msra.mxu0 0.0
    %785 = vmatprep.subr.mxu0 0.0
    %786 = vmatpush1.xpose.msra.mxu0 0.0
    %787 = vmatprep.subr.mxu0 0.0
    %788 = vmatpush1.xpose.msra.mxu0 0.0
    %789 = vmatprep.subr.mxu0 0.0
    %790 = vmatpush1.xpose.msra.mxu0 0.0
    %791 = vmatprep.subr.mxu0 0.0
    %792 = vmatpush1.xpose.msra.mxu0 0.0
    %793 = vmatprep.subr.mxu0 0.0
    %794 = vmatpush1.xpose.msra.mxu0 0.0
    %795 = vmatprep.subr.mxu0 0.0
    %796 = vmatpush1.xpose.msra.mxu0 0.0
    %797 = vmatprep.subr.mxu0 0.0
    %798 = vmatpush1.xpose.msra.mxu0 0.0
    %799 = vmatprep.subr.mxu0 0.0
    %800 = vmatpush1.xpose.msra.mxu0 0.0
    %801 = vmatprep.subr.mxu0 0.0
    %802 = vmatpush1.xpose.msra.mxu0 0.0
    %803 = vmatprep.subr.mxu0 0.0
    %804 = vmatpush1.xpose.msra.mxu0 0.0
    %805 = vmatprep.subr.mxu0 0.0
    %806 = vmatpush1.xpose.msra.mxu0 0.0
    %807 = vmatprep.subr.mxu0 0.0
    %808 = vmatpush1.xpose.msra.mxu0 0.0
    %809 = vmatprep.subr.mxu0 0.0
    %810 = vmatpush1.xpose.msra.mxu0 0.0
    %811 = vmatprep.subr.mxu0 0.0
    %812 = vmatpush1.xpose.msra.mxu0 0.0
    %813 = vmatprep.subr.mxu0 0.0
    %814 = vmatpush1.xpose.msra.mxu0 0.0
    %815 = vmatprep.subr.mxu0 0.0
    %816 = vmatpush1.xpose.msra.mxu0 0.0
    %817 = vmatprep.subr.mxu0 0.0
    %818 = vmatpush1.xpose.msra.mxu0 0.0
    %819 = vmatprep.subr.mxu0 0.0
    %820 = vmatpush1.xpose.msra.mxu0 0.0
    %821 = vmatprep.subr.mxu0 0.0
    %822 = vmatpush1.xpose.msra.mxu0 0.0
    %823 = vmatprep.subr.mxu0 0.0
    %824 = vmatpush1.xpose.msra.mxu0 0.0
    %825 = vmatprep.subr.mxu0 0.0
    %826 = vmatpush1.xpose.msra.mxu0 0.0
    %827 = vmatprep.subr.mxu0 0.0
    %828 = vmatpush1.xpose.msra.mxu0 0.0
    %829 = vmatprep.subr.mxu0 0.0
    %830 = vmatpush1.xpose.msra.mxu0 0.0
    %831 = vmatprep.subr.mxu0 0.0
    %832 = vmatpush1.xpose.msra.mxu0 0.0
    %833 = vmatprep.subr.mxu0 0.0
    %834 = vmatpush1.xpose.msra.mxu0 0.0
    %835 = vmatprep.subr.mxu0 0.0
    %836 = vmatpush1.xpose.msra.mxu0 0.0
    %837 = vmatprep.subr.mxu0 0.0
    %838 = vmatpush1.xpose.msra.mxu0 0.0
    %839 = vmatprep.mubr.f32.mxu0 0.0
    %v840 = vand.u32 %v543, 4294901760
    %v841 = vsub.f32 %v543, %v840
    %v842 = vand.u32 %v841, 4294901760
    %843 = vmatmul.mubr.f32.gmra.mrb[0].mxu0 %v842
    %v844 = vpop.f32.mrb[0].mxu0
    %v845 = vadd.f32 %v771, %v844
    %v846 = vpop.f32.mrb[0].mxu0
    %847 = vdwg.mxu0
    %848 = vmatprep.subr.mxu0 0.0
    %v849 = vand.u32 %v546, 4294901760
    %v850 = vsub.f32 %v546, %v849
    %v851 = vand.u32 %v850, 4294901760
    %852 = vmatpush1.xpose.msra.mxu0 %v851
    %853 = vmatprep.subr.mxu0 0.0
    %854 = vmatpush1.xpose.msra.mxu0 0.0
    %855 = vmatprep.subr.mxu0 0.0
    %856 = vmatpush1.xpose.msra.mxu0 0.0
    %857 = vmatprep.subr.mxu0 0.0
    %858 = vmatpush1.xpose.msra.mxu0 0.0
    %859 = vmatprep.subr.mxu0 0.0
    %860 = vmatpush1.xpose.msra.mxu0 0.0
    %861 = vmatprep.subr.mxu0 0.0
    %862 = vmatpush1.xpose.msra.mxu0 0.0
    %863 = vmatprep.subr.mxu0 0.0
    %864 = vmatpush1.xpose.msra.mxu0 0.0
    %865 = vmatprep.subr.mxu0 0.0
    %866 = vmatpush1.xpose.msra.mxu0 0.0
    %867 = vmatprep.subr.mxu0 0.0
    %868 = vmatpush1.xpose.msra.mxu0 0.0
    %869 = vmatprep.subr.mxu0 0.0
    %870 = vmatpush1.xpose.msra.mxu0 0.0
    %871 = vmatprep.subr.mxu0 0.0
    %872 = vmatpush1.xpose.msra.mxu0 0.0
    %873 = vmatprep.subr.mxu0 0.0
    %874 = vmatpush1.xpose.msra.mxu0 0.0
    %875 = vmatprep.subr.mxu0 0.0
    %876 = vmatpush1.xpose.msra.mxu0 0.0
    %877 = vmatprep.subr.mxu0 0.0
    %878 = vmatpush1.xpose.msra.mxu0 0.0
    %879 = vmatprep.subr.mxu0 0.0
    %880 = vmatpush1.xpose.msra.mxu0 0.0
    %881 = vmatprep.subr.mxu0 0.0
    %882 = vmatpush1.xpose.msra.mxu0 0.0
    %883 = vmatprep.subr.mxu0 0.0
    %884 = vmatpush1.xpose.msra.mxu0 0.0
    %885 = vmatprep.subr.mxu0 0.0
    %886 = vmatpush1.xpose.msra.mxu0 0.0
    %887 = vmatprep.subr.mxu0 0.0
    %888 = vmatpush1.xpose.msra.mxu0 0.0
    %889 = vmatprep.subr.mxu0 0.0
    %890 = vmatpush1.xpose.msra.mxu0 0.0
    %891 = vmatprep.subr.mxu0 0.0
    %892 = vmatpush1.xpose.msra.mxu0 0.0
    %893 = vmatprep.subr.mxu0 0.0
    %894 = vmatpush1.xpose.msra.mxu0 0.0
    %895 = vmatprep.subr.mxu0 0.0
    %896 = vmatpush1.xpose.msra.mxu0 0.0
    %897 = vmatprep.subr.mxu0 0.0
    %898 = vmatpush1.xpose.msra.mxu0 0.0
    %899 = vmatprep.subr.mxu0 0.0
    %900 = vmatpush1.xpose.msra.mxu0 0.0
    %901 = vmatprep.subr.mxu0 0.0
    %902 = vmatpush1.xpose.msra.mxu0 0.0
    %903 = vmatprep.subr.mxu0 0.0
    %904 = vmatpush1.xpose.msra.mxu0 0.0
    %905 = vmatprep.subr.mxu0 0.0
    %906 = vmatpush1.xpose.msra.mxu0 0.0
    %907 = vmatprep.subr.mxu0 0.0
    %908 = vmatpush1.xpose.msra.mxu0 0.0
    %909 = vmatprep.subr.mxu0 0.0
    %910 = vmatpush1.xpose.msra.mxu0 0.0
    %911 = vmatprep.subr.mxu0 0.0
    %912 = vmatpush1.xpose.msra.mxu0 0.0
    %913 = vmatprep.subr.mxu0 0.0
    %914 = vmatpush1.xpose.msra.mxu0 0.0
    %915 = vmatprep.mubr.f32.mxu0 0.0
    %v916 = vand.u32 %v543, 4294901760
    %917 = vmatmul.mubr.f32.gmra.mrb[0].mxu0 %v916
    %v918 = vpop.f32.mrb[0].mxu0
    %v919 = vadd.f32 %v845, %v918
    %v920 = vpop.f32.mrb[0].mxu0
    %921 = vdwg.mxu0
    %922 = vmatprep.subr.mxu0 0.0
    %v923 = vand.u32 %v546, 4294901760
    %924 = vmatpush1.xpose.msra.mxu0 %v923
    %925 = vmatprep.subr.mxu0 0.0
    %926 = vmatpush1.xpose.msra.mxu0 0.0
    %927 = vmatprep.subr.mxu0 0.0
    %928 = vmatpush1.xpose.msra.mxu0 0.0
    %929 = vmatprep.subr.mxu0 0.0
    %930 = vmatpush1.xpose.msra.mxu0 0.0
    %931 = vmatprep.subr.mxu0 0.0
    %932 = vmatpush1.xpose.msra.mxu0 0.0
    %933 = vmatprep.subr.mxu0 0.0
    %934 = vmatpush1.xpose.msra.mxu0 0.0
    %935 = vmatprep.subr.mxu0 0.0
    %936 = vmatpush1.xpose.msra.mxu0 0.0
    %937 = vmatprep.subr.mxu0 0.0
    %938 = vmatpush1.xpose.msra.mxu0 0.0
    %939 = vmatprep.subr.mxu0 0.0
    %940 = vmatpush1.xpose.msra.mxu0 0.0
    %941 = vmatprep.subr.mxu0 0.0
    %942 = vmatpush1.xpose.msra.mxu0 0.0
    %943 = vmatprep.subr.mxu0 0.0
    %944 = vmatpush1.xpose.msra.mxu0 0.0
    %945 = vmatprep.subr.mxu0 0.0
    %946 = vmatpush1.xpose.msra.mxu0 0.0
    %947 = vmatprep.subr.mxu0 0.0
    %948 = vmatpush1.xpose.msra.mxu0 0.0
    %949 = vmatprep.subr.mxu0 0.0
    %950 = vmatpush1.xpose.msra.mxu0 0.0
    %951 = vmatprep.subr.mxu0 0.0
    %952 = vmatpush1.xpose.msra.mxu0 0.0
    %953 = vmatprep.subr.mxu0 0.0
    %954 = vmatpush1.xpose.msra.mxu0 0.0
    %955 = vmatprep.subr.mxu0 0.0
    %956 = vmatpush1.xpose.msra.mxu0 0.0
    %957 = vmatprep.subr.mxu0 0.0
    %958 = vmatpush1.xpose.msra.mxu0 0.0
    %959 = vmatprep.subr.mxu0 0.0
    %960 = vmatpush1.xpose.msra.mxu0 0.0
    %961 = vmatprep.subr.mxu0 0.0
    %962 = vmatpush1.xpose.msra.mxu0 0.0
    %963 = vmatprep.subr.mxu0 0.0
    %964 = vmatpush1.xpose.msra.mxu0 0.0
    %965 = vmatprep.subr.mxu0 0.0
    %966 = vmatpush1.xpose.msra.mxu0 0.0
    %967 = vmatprep.subr.mxu0 0.0
    %968 = vmatpush1.xpose.msra.mxu0 0.0
    %969 = vmatprep.subr.mxu0 0.0
    %970 = vmatpush1.xpose.msra.mxu0 0.0
    %971 = vmatprep.subr.mxu0 0.0
    %972 = vmatpush1.xpose.msra.mxu0 0.0
    %973 = vmatprep.subr.mxu0 0.0
    %974 = vmatpush1.xpose.msra.mxu0 0.0
    %975 = vmatprep.subr.mxu0 0.0
    %976 = vmatpush1.xpose.msra.mxu0 0.0
    %977 = vmatprep.subr.mxu0 0.0
    %978 = vmatpush1.xpose.msra.mxu0 0.0
    %979 = vmatprep.subr.mxu0 0.0
    %980 = vmatpush1.xpose.msra.mxu0 0.0
    %981 = vmatprep.subr.mxu0 0.0
    %982 = vmatpush1.xpose.msra.mxu0 0.0
    %983 = vmatprep.subr.mxu0 0.0
    %984 = vmatpush1.xpose.msra.mxu0 0.0
    %985 = vmatprep.subr.mxu0 0.0
    %986 = vmatpush1.xpose.msra.mxu0 0.0
    %987 = vmatprep.mubr.f32.mxu0 0.0
    %v988 = vand.u32 %v543, 4294901760
    %989 = vmatmul.mubr.f32.gmra.mrb[0].mxu0 %v988
    %v990 = vpop.f32.mrb[0].mxu0
    %v991 = vadd.f32 %v919, %v990
    %v992 = vpop.f32.mrb[0].mxu0
    %993 = vdwg.mxu0
    %v994 = vmul.f32 %v991, 0.5
    %vm995 = vcmask 64512
    %v996 = vsel %vm995, %v541, 0.0
    %997 = vadd.xlane.f32.xlu0 %v996
    %v998 = vpop.xlane.xlu0 %997
    %v999 = vrcp.pop %v998
    %v1000 = vmul.f32 1.0, %v999
    %v1001 = vmul.f32 %v541, %v1000
    %v1002 = vsel %vm995, %v994, 0.0
    %1003 = vadd.xlane.f32.xlu0 %v1002
    %v1004 = vpop.xlane.xlu0 %1003
    %v1005 = vrcp.pop %v1004
    %v1006 = vmul.f32 1.0, %v1005
    %v1007 = vmul.f32 %v994, %v1006
    %v1008 = vadd.f32 %v1007, 1e-07
    %v1009 = vadd.f32 %v1001, 1e-07
    %v1010 = vrcp.pop %v1009
    %v1011 = vmul.f32 %v1008, %v1010
    %v1012 = vlog2.pop %v1011
    %v1013 = vmul.f32 %v1012, 0.6931472
    %v1014 = vmul.f32 %v1007, %v1013
    %v1015 = vld [vmem:[#allocation4] sm:$0xff]
    %v1016 = vadd.f32 %v1015, %v1014
    %1017 = vst.msk [vmem:[#allocation4] sm:$0xff] %vm995, %v1016
    // Predicated region
    $region22: #{tpu_custom_call.1} parent=1 // pred_check
      %p1018 = pneg %p36
    $region23: #{tpu_custom_call.1} parent=1 // pred_check_branch
      %1020 = sbr.rel (%p1018) target = $region25
    $region24: #{tpu_custom_call.1} parent=1 // pred_region
      %v1021 = vld [vmem:[#allocation4] sm:$0xff]
      %v1022 = vsel %vm995, %v1021, 0.0
      %1023 = vadd.xlane.f32.xlu0 %v1022
      %v1024 = vpop.xlane.xlu0 %1023
      %v1025 = vrot.slane %v1024, 4
      %v1026 = vadd.f32 %v1024, %v1025
      %v1027 = vrot.slane %v1026, 2
      %v1028 = vadd.f32 %v1026, %v1027
      %v1029 = vrot.slane %v1028, 1
      %v1030 = vadd.f32 %v1028, %v1029
      %s1031 = vtos %v1030
      %v1032 = vstv %s1031
      %v1033 = vmul.f32 %v1032, 0.015625
      %vm1034 = vcmask 0
      %1035 = vst.msk [vmem:[#allocation10] sm:$0x1] %vm1034, %v1033
    $region25: #{tpu_custom_call.1} parent=1 // pred_fallthru
      _
    // Predicated region
    $region26: #{tpu_custom_call.1} parent=1 // pred_check
      _
    $region27: #{tpu_custom_call.1} parent=1 // pred_check_branch
      %1037 = sbr.rel (0) target = $region29
    $region28: #{tpu_custom_call.1} parent=1 // pred_region
      %s1039 = ssub.s32 16, 16
      %1040 = vsyncadd [#allocation7], %s1039
      %s1042 = sshll.u32 [#allocation10], 4
      %s1043 = int_to_ptr.vmem [resolvable:$true] %s1042
      %1045 = dma.vmem_to_hbm [thread:$0]  %s1043, 16, %s2, [#allocation7]
    $region29: #{tpu_custom_call.1} parent=1 // pred_fallthru
      _
    // Predicated region
    $region30: #{tpu_custom_call.1} parent=1 // pred_check
      _
    $region31: #{tpu_custom_call.1} parent=1 // pred_check_branch
      %1047 = sbr.rel (0) target = $region33
    $region32: #{tpu_custom_call.1} parent=1 // pred_region
      %1048 = dma.done [#allocation7], 16
    $region33: #{tpu_custom_call.1} parent=1 // pred_fallthru
      _
    %1049 = vsyncpa [#allocation6], 1
    %1050 = vsyncpa [#allocation9], 1
    %1051 = vsyncpa [#allocation7], 1

</llo_original>
